<compile_context>
chip_gen: v7x
topology: tpu7x:2x2x1
jax: 0.10.0
libtpu: 0.0.40
codegen_flags: <defaults>
</compile_context>

<pallas_src>
import jax
import jax.numpy as jnp
from jax.experimental import pallas as pl
from jax.experimental.pallas import tpu as pltpu

C_IN_BRANCH = 3          # channels per siamese branch
C_IN = 2 * C_IN_BRANCH   # 6, channels of the concatenated input
C_FEAT = 48              # decoder_filters[-5]
C_CAT = 2 * C_FEAT       # 96, input channels of `res`
C_OUT = 5                # output channels of `res`

LANE = 128               # TPU lane width
CHUNK = 512              # in-kernel pixel chunk (h chunk = (96,512) f32 = 48 vregs)
MAX_TILE_PIX = 16384     # max pixels per grid step (lane axis)


def _round_up(n, m):
    return ((n + m - 1) // m) * m


def _choose_tiling(batch, hw):
    """Adaptive, lane-dense pixel tiling with minimal padding.

    Returns (n_tiles, thw, chunk, hw_pad) with hw_pad = n_tiles * thw >= hw,
    thw a multiple of `chunk` (itself a multiple of 128).
    """
    n_tiles = pl.cdiv(hw, MAX_TILE_PIX)
    # v7x has 2 TensorCores: guarantee >= 2 steps on a parallel grid axis even
    # when B == 1, so the second core is not idle.
    if batch * n_tiles < 2 and hw >= 2 * LANE:
        n_tiles = 2
    per_tile = pl.cdiv(hw, n_tiles)
    align = CHUNK if per_tile >= CHUNK else LANE
    thw = _round_up(per_tile, align)
    chunk = min(CHUNK, thw)
    hw_pad = n_tiles * thw
    return n_tiles, thw, chunk, hw_pad


def _make_kernel(chunk, n_chunks, unroll):
    """Kernel for one (batch, pixel-tile) grid step; chunked fused matmuls."""

    def kernel(x_ref, wf_ref, bf_ref, wrt_ref, br_ref, o_ref):
        # x_ref : (6, THW)   input pixels, channels on sublanes (batch squeezed)
        # wf_ref: (96, 6)    block-diag [[w1.T, 0], [0, w1.T]] (branches+concat fused)
        # bf_ref: (96, 1)    [b1; b1]          (f32)
        # wrt_ref:(5, 96)    res weight, transposed
        # br_ref: (5, 1)     res bias          (f32)
        # o_ref : (5, THW)   output pixels     (f32)
        wf = wf_ref[...]                                        # (96, 6)
        wrt = wrt_ref[...]                                      # (5, 96)
        # Hoist bias broadcasts out of the chunk loop (JAX does not CSE them).
        bf = jnp.broadcast_to(bf_ref[...], (C_CAT, chunk))      # (96, chunk) f32
        br = jnp.broadcast_to(br_ref[...], (C_OUT, chunk))      # (5, chunk)  f32

        def body(c, carry):
            start = pl.multiple_of(c * chunk, chunk)
            x_c = x_ref[:, pl.ds(start, chunk)]                 # (6, chunk)
            h = jnp.dot(wf, x_c, preferred_element_type=jnp.float32) + bf
            h = jnp.maximum(h, 0.0)                             # ReLU, f32 (VPU)
            out_c = jnp.dot(wrt, h.astype(wrt.dtype),
                            preferred_element_type=jnp.float32) + br
            o_ref[:, pl.ds(start, chunk)] = out_c.astype(o_ref.dtype)
            return carry

        jax.lax.fori_loop(0, n_chunks, body, 0, unroll=unroll)

    return kernel


def siamese_forward(x_nchw, w1, b1, wr, br, *, input_dtype=jnp.float32):
    """x_nchw: (B, 6, H, W) float32  ->  (B, 5, H, W) float32.

    w1: (3, 48)  shared forward_once 1x1-conv weight (in, out)
    b1: (48,)    shared forward_once bias
    wr: (96, 5)  res 1x1-conv weight (in, out)
    br: (5,)     res bias
    input_dtype: dtype fed to the MXU for x / weights (f32 or bf16).
                 Accumulation, biases, ReLU and the output stay f32.
    """
    B, C, H, W = x_nchw.shape
    assert C == C_IN
    HW = H * W

    n_tiles, thw, chunk, hw_pad = _choose_tiling(B, HW)
    n_chunks = thw // chunk
    unroll = n_chunks if n_chunks <= 8 else 4

    # Free reshape (contiguous). Pad the pixel axis only when actually needed.
    x_flat = x_nchw.reshape(B, C_IN, HW).astype(input_dtype)
    if hw_pad != HW:
        x_flat = jnp.pad(x_flat, ((0, 0), (0, 0), (0, hw_pad - HW)))

    # Fuse the two shared-weight branches + channel concat into one matmul:
    # block-diagonal (96, 6) weight and concatenated (96, 1) bias.
    w1t = w1.T.astype(jnp.float32)                               # (48, 3)
    zeros = jnp.zeros((C_FEAT, C_IN_BRANCH), jnp.float32)
    w_fused = jnp.concatenate(
        [jnp.concatenate([w1t, zeros], axis=1),
         jnp.concatenate([zeros, w1t], axis=1)], axis=0).astype(input_dtype)  # (96,6)
    b_fused = jnp.concatenate([b1, b1]).reshape(C_CAT, 1).astype(jnp.float32)
    wrt = wr.T.astype(input_dtype)                               # (5, 96)
    br2 = br.reshape(C_OUT, 1).astype(jnp.float32)               # (5, 1)

    itemsize = jnp.dtype(input_dtype).itemsize
    m_pix = B * hw_pad                                           # padded per-call pixels
    cost = pl.CostEstimate(
        flops=2 * m_pix * (C_IN * C_CAT + C_CAT * C_OUT),
        transcendentals=0,
        bytes_accessed=(m_pix * C_IN * itemsize                  # x read
                        + m_pix * C_OUT * 4                      # out write
                        + (C_CAT * C_IN + C_OUT * C_CAT) * itemsize
                        + (C_CAT + C_OUT) * 4),
    )

    kernel = _make_kernel(chunk, n_chunks, unroll)

    out_flat = pl.pallas_call(
        kernel,
        out_shape=jax.ShapeDtypeStruct((B, C_OUT, hw_pad), jnp.float32),
        grid_spec=pltpu.PrefetchScalarGridSpec(
            num_scalar_prefetch=0,
            grid=(B, n_tiles),
            in_specs=[
                pl.BlockSpec((None, C_IN, thw), lambda b, j: (b, 0, j)),   # x slab
                pl.BlockSpec((C_CAT, C_IN), lambda b, j: (0, 0)),          # w_fused
                pl.BlockSpec((C_CAT, 1), lambda b, j: (0, 0)),             # b_fused
                pl.BlockSpec((C_OUT, C_CAT), lambda b, j: (0, 0)),         # wr.T
                pl.BlockSpec((C_OUT, 1), lambda b, j: (0, 0)),             # br
            ],
            out_specs=pl.BlockSpec((None, C_OUT, thw), lambda b, j: (b, 0, j)),
        ),
        compiler_params=pltpu.CompilerParams(
            dimension_semantics=("parallel", "parallel")),
        cost_estimate=cost,
    )(x_flat, w_fused, b_fused, wrt, br2)

    # Drop pixel padding (padded columns are relu(b)-garbage; the slice removes
    # them), reshape back to NCHW (free: last-axis slice + contiguous reshape).
    return out_flat[:, :, :HW].reshape(B, C_OUT, H, W)


def _reference(x_nchw, w1, b1, wr, br):
    """Pure-JAX reference mirroring the PyTorch forward."""
    B, C, H, W = x_nchw.shape
    x_rows = jnp.transpose(x_nchw, (0, 2, 3, 1)).reshape(-1, C)          # (M, 6)
    h1 = jnp.maximum(x_rows[:, :C_IN_BRANCH] @ w1 + b1, 0.0)
    h2 = jnp.maximum(x_rows[:, C_IN_BRANCH:] @ w1 + b1, 0.0)
    out = jnp.concatenate([h1, h2], axis=1) @ wr + br                    # (M, 5)
    return jnp.transpose(out.reshape(B, H, W, C_OUT), (0, 3, 1, 2))


if __name__ == "__main__":
    key = jax.random.PRNGKey(0)
    kx, kw1, kb1, kwr, kbr = jax.random.split(key, 5)

    # Deterministic synthetic parameters (not a checkpoint load).
    w1 = 0.1 * jax.random.normal(kw1, (C_IN_BRANCH, C_FEAT), dtype=jnp.float32)
    b1 = 0.01 * jax.random.normal(kb1, (C_FEAT,), dtype=jnp.float32)
    wr = 0.1 * jax.random.normal(kwr, (C_CAT, C_OUT), dtype=jnp.float32)
    br = 0.01 * jax.random.normal(kbr, (C_OUT,), dtype=jnp.float32)

    # Small canonical shape: single tile, single chunk, no padding.
    B, H, W = 2, 16, 16
    x = jax.random.normal(kx, (B, C_IN, H, W), dtype=jnp.float32)
    out = siamese_forward(x, w1, b1, wr, br)
    jax.block_until_ready(out)
    assert out.shape == (B, C_OUT, H, W), out.shape
    ref = _reference(x, w1, b1, wr, br)
    assert jnp.allclose(out, ref, rtol=1e-5, atol=1e-4), \
        float(jnp.max(jnp.abs(out - ref)))

    # Shape exercising the forced 2-tile split (B==1), pixel padding and the
    # multi-chunk in-kernel loop.
    x2 = jax.random.normal(kx, (1, C_IN, 48, 48), dtype=jnp.float32)
    out2 = siamese_forward(x2, w1, b1, wr, br)
    jax.block_until_ready(out2)
    ref2 = _reference(x2, w1, b1, wr, br)
    assert jnp.allclose(out2, ref2, rtol=1e-5, atol=1e-4), \
        float(jnp.max(jnp.abs(out2 - ref2)))

    # Optional bf16-input path (halves HBM read traffic; f32 accumulation).
    out_bf16 = siamese_forward(x, w1, b1, wr, br, input_dtype=jnp.bfloat16)
    jax.block_until_ready(out_bf16)
    assert jnp.allclose(out_bf16, ref, rtol=5e-2, atol=5e-2), \
        float(jnp.max(jnp.abs(out_bf16 - ref)))

    print("KERNEL_OK")
</pallas_src>

<mosaic_0001>
module attributes {stable_mosaic.version = 11 : i64} {
  func.func @kernel(%arg0: i32, %arg1: i32, %arg2: memref<1x6x256xf32, #tpu.memory_space<vmem>>, %arg3: memref<96x6xf32, #tpu.memory_space<vmem>>, %arg4: memref<96x1xf32, #tpu.memory_space<vmem>>, %arg5: memref<5x96xf32, #tpu.memory_space<vmem>>, %arg6: memref<5x1xf32, #tpu.memory_space<vmem>>, %arg7: memref<1x5x256xf32, #tpu.memory_space<vmem>>) attributes {dimension_semantics = [#tpu.dimension_semantics<parallel>, #tpu.dimension_semantics<parallel>], iteration_bounds = array<i64: 2, 1>, scalar_prefetch = 0 : i64, scratch_operands = 0 : i64, tpu.core_type = #tpu.core_type<tc>, window_params = [{transform_indices = @transform_0, window_bounds = array<i64: 1, 6, 256>}, {pipeline_mode = #tpu.pipeline_mode<synchronous>, transform_indices = @transform_1, window_bounds = array<i64: 96, 6>}, {pipeline_mode = #tpu.pipeline_mode<synchronous>, transform_indices = @transform_2, window_bounds = array<i64: 96, 1>}, {pipeline_mode = #tpu.pipeline_mode<synchronous>, transform_indices = @transform_3, window_bounds = array<i64: 5, 96>}, {pipeline_mode = #tpu.pipeline_mode<synchronous>, transform_indices = @transform_4, window_bounds = array<i64: 5, 1>}, {transform_indices = @transform_5, window_bounds = array<i64: 1, 5, 256>}]} {
    %c0 = arith.constant 0 : index
    %c0_0 = arith.constant 0 : index
    %0 = vector.load %arg3[%c0, %c0_0] : memref<96x6xf32, #tpu.memory_space<vmem>>, vector<96x6xf32>
    %c0_1 = arith.constant 0 : index
    %c0_2 = arith.constant 0 : index
    %1 = vector.load %arg5[%c0_1, %c0_2] : memref<5x96xf32, #tpu.memory_space<vmem>>, vector<5x96xf32>
    %c0_3 = arith.constant 0 : index
    %c0_4 = arith.constant 0 : index
    %2 = vector.load %arg4[%c0_3, %c0_4] : memref<96x1xf32, #tpu.memory_space<vmem>>, vector<96x1xf32>
    %3 = vector.shape_cast %2 : vector<96x1xf32> to vector<96x1xf32>
    %4 = vector.broadcast %3 : vector<96x1xf32> to vector<96x256xf32>
    %c0_5 = arith.constant 0 : index
    %c0_6 = arith.constant 0 : index
    %5 = vector.load %arg6[%c0_5, %c0_6] : memref<5x1xf32, #tpu.memory_space<vmem>>, vector<5x1xf32>
    %6 = vector.shape_cast %5 : vector<5x1xf32> to vector<5x1xf32>
    %7 = vector.broadcast %6 : vector<5x1xf32> to vector<5x256xf32>
    %c0_i32 = arith.constant 0 : i32
    %c256_i32 = arith.constant 256 : i32
    %8 = arith.muli %c0_i32, %c256_i32 : i32
    %9 = tpu.assume_multiple %8, 256 : i32
    %c0_7 = arith.constant 0 : index
    %c0_8 = arith.constant 0 : index
    %10 = arith.index_cast %9 : i32 to index
    %11 = vector.load %arg2[%c0_7, %c0_8, %10] : memref<1x6x256xf32, #tpu.memory_space<vmem>>, vector<1x6x256xf32>
    %12 = vector.shape_cast %11 : vector<1x6x256xf32> to vector<6x256xf32>
    %cst = arith.constant dense<0.000000e+00> : vector<96x256xf32>
    %13 = tpu.matmul %0, %12, %cst {dimension_numbers = #tpu.dot_dimension_numbers<[1], [0], [0], [1], [0, 0, 1, 1], [], []>} : vector<96x6xf32>, vector<6x256xf32>, vector<96x256xf32> -> vector<96x256xf32>
    %14 = arith.addf %13, %4 : vector<96x256xf32>
    %cst_9 = arith.constant 0.000000e+00 : f32
    %15 = vector.broadcast %cst_9 : f32 to vector<96x256xf32>
    %16 = arith.maximumf %14, %15 : vector<96x256xf32>
    %cst_10 = arith.constant dense<0.000000e+00> : vector<5x256xf32>
    %17 = tpu.matmul %1, %16, %cst_10 {dimension_numbers = #tpu.dot_dimension_numbers<[1], [0], [0], [1], [0, 0, 1, 1], [], []>} : vector<5x96xf32>, vector<96x256xf32>, vector<5x256xf32> -> vector<5x256xf32>
    %18 = arith.addf %17, %7 : vector<5x256xf32>
    %c0_11 = arith.constant 0 : index
    %c0_12 = arith.constant 0 : index
    %19 = arith.index_cast %9 : i32 to index
    %20 = vector.load %arg7[%c0_11, %c0_12, %19] : memref<1x5x256xf32, #tpu.memory_space<vmem>>, vector<1x5x256xf32>
    %21 = vector.shape_cast %20 : vector<1x5x256xf32> to vector<5x256xf32>
    %22 = vector.shape_cast %18 : vector<5x256xf32> to vector<1x5x256xf32>
    tpu.vector_store %arg7[%c0_11, %c0_12, %19], %22 {strides = array<i32>} : memref<1x5x256xf32, #tpu.memory_space<vmem>>, vector<1x5x256xf32>,
    %c1_i32 = arith.constant 1 : i32
    return
  }
  func.func @transform_0(%arg0: i32, %arg1: i32) -> (i32, i32, i32) {
    %c0_i32 = arith.constant 0 : i32
    %c0_i32_0 = arith.constant 0 : i32
    return %arg0, %c0_i32, %arg1 : i32, i32, i32
  }
  func.func @transform_1(%arg0: i32, %arg1: i32) -> (i32, i32) {
    %c0_i32 = arith.constant 0 : i32
    %c0_i32_0 = arith.constant 0 : i32
    %c0_i32_1 = arith.constant 0 : i32
    return %c0_i32, %c0_i32_0 : i32, i32
  }
  func.func @transform_2(%arg0: i32, %arg1: i32) -> (i32, i32) {
    %c0_i32 = arith.constant 0 : i32
    %c0_i32_0 = arith.constant 0 : i32
    %c0_i32_1 = arith.constant 0 : i32
    return %c0_i32, %c0_i32_0 : i32, i32
  }
  func.func @transform_3(%arg0: i32, %arg1: i32) -> (i32, i32) {
    %c0_i32 = arith.constant 0 : i32
    %c0_i32_0 = arith.constant 0 : i32
    %c0_i32_1 = arith.constant 0 : i32
    return %c0_i32, %c0_i32_0 : i32, i32
  }
  func.func @transform_4(%arg0: i32, %arg1: i32) -> (i32, i32) {
    %c0_i32 = arith.constant 0 : i32
    %c0_i32_0 = arith.constant 0 : i32
    %c0_i32_1 = arith.constant 0 : i32
    return %c0_i32, %c0_i32_0 : i32, i32
  }
  func.func @transform_5(%arg0: i32, %arg1: i32) -> (i32, i32, i32) {
    %c0_i32 = arith.constant 0 : i32
    %c0_i32_0 = arith.constant 0 : i32
    return %arg0, %c0_i32, %arg1 : i32, i32, i32
  }
}

</mosaic_0001>

<llo_original>
// kernel: tpu_custom_call.1
$region0: #{tpu_custom_call.1}
  #allocation0 [shape = 'u32[]', space=smem, size = 0x4, offset = 0x4, fixed_abs, tag = 'smem constant byte address 0x4 - core index']
  #allocation1 [shape = 'u32[144,128]{1,0:T(1,128)}', space=vmem, size = 0x12000, scoped, tag = 'internal scratch']
  %s0 = inlined_call_operand.vmem [shape: f32[2,6,256], index: 0, kind: input, shape index: {}]
  %s1 = inlined_call_operand.vmem [shape: f32[96,6], index: 1, kind: input, shape index: {}]
  %s2 = inlined_call_operand.vmem [shape: f32[96,1], index: 2, kind: input, shape index: {}]
  %s3 = inlined_call_operand.vmem [shape: f32[5,96], index: 3, kind: input, shape index: {}]
  %s4 = inlined_call_operand.vmem [shape: f32[5,1], index: 4, kind: input, shape index: {}]
  %s5 = inlined_call_operand.vmem [shape: f32[2,5,256], index: 5, kind: output, shape index: {}]
  %s6 = sld [smem:[#allocation0]]
  $region53: #{tpu_custom_call.1} parent=0
    _
  %s8 = ssub.s32 1, %s6
  %s9 = scalar_select 0, %s8, %s6
  loop: start=0, step=1, limit=4
  $region2: #{tpu_custom_call.1} parent=0 // loop_pre_header
    _
  $region3: #{tpu_custom_call.1} parent=0 // loop_header
    %s11 = sphi 0, %s15
    %p12 = scmp.ge.s32.totalorder %s11, 4
    %s18 = sphi 0, %s30
    %s19 = sphi 0, %s26
    %s20 = sphi 0, %s18
    %s21 = sphi 0, %s19
    %s22 = sphi 0, %s20
    %s23 = sphi 0, %s21
    %s35 = sphi 0, %s37
    %s38 = sphi 0, %s35
    %s39 = sphi 0, %s38
    %s55 = sphi 0, %s39
    %s59 = sphi 0, %s59
    %s61 = sphi 0, %s59
    %s62 = sphi 0, %s61
    %s76 = sphi 0, %s62
    %s80 = sphi 0, %s80
    %s82 = sphi 0, %s80
    %s83 = sphi 0, %s82
    %s97 = sphi 0, %s83
    %s101 = sphi 0, %s101
    %s103 = sphi 0, %s101
    %s104 = sphi 0, %s103
    %s118 = sphi 0, %s104
    %s122 = sphi 0, %s122
    %s124 = sphi 0, %s122
    %s125 = sphi 0, %s124
    %s139 = sphi 0, %s125
    %s147 = sphi 0, %s149
    %s150 = sphi 0, %s147
    %s151 = sphi 0, %s150
    %s167 = sphi 0, %s151
  $region4: #{tpu_custom_call.1} parent=0 // loop_header_branch
    %14 = sbr.rel (%p12) target = $region8
  $region5: #{tpu_custom_call.1} parent=0 // loop_body
    %s16 = ssub.s32 %s11, 1
    %s17 = ssub.s32 %s11, 2
    %s24 = sadd.s32 1, %s19
    %p25 = scmp.ge.s32.totalorder %s24, 1
    %s26 = scalar_select %p25, 0, %s24
    %s27 = sadd.s32 1, %s18
    %s28 = scalar_select %p25, %s27, %s18
    %p29 = scmp.ge.s32.totalorder %s28, 2
    %s30 = scalar_select %p29, 0, %s28
    %s31 = ssub.s32 %s18, %s30
    %s32 = ssub.s32 %s19, %s26
    %s33 = sor.u32 %s31, %s32
    %p34 = scmp.eq.s32.totalorder %s33, 0
    %s36 = sadd.s32 %s35, 1
    %s37 = scalar_select %p34, %s35, %s36
    %p40 = pneg %p34
    %p41 = scmp.eq.s32.totalorder %s11, 1
    %p42 = por %p40, %p41
    %p43 = scmp.ne.s32.totalorder %s35, %s38
    %p44 = scmp.eq.s32.totalorder %s11, 0
    %p45 = por %p43, %p44
    %p46 = scmp.ne.s32.totalorder %s35, %s38
    %p47 = scmp.eq.s32.totalorder %s16, 1
    %p48 = por %p46, %p47
    %p49 = scmp.ne.s32.totalorder %s38, %s39
    %p50 = scmp.eq.s32.totalorder %s16, 0
    %p51 = por %p49, %p50
    %p52 = scmp.ne.s32.totalorder %s38, %s39
    %p53 = scmp.eq.s32.totalorder %s17, 1
    %p54 = por %p52, %p53
    %p56 = scmp.ne.s32.totalorder %s39, %s55
    %p57 = scmp.eq.s32.totalorder %s17, 0
    %p58 = por %p56, %p57
    %s60 = sadd.s32 %s59, 1
    %p63 = scmp.eq.s32.totalorder %s11, 1
    %p64 = scmp.ne.s32.totalorder %s59, %s61
    %p65 = scmp.eq.s32.totalorder %s11, 0
    %p66 = por %p64, %p65
    %p67 = scmp.ne.s32.totalorder %s59, %s61
    %p68 = scmp.eq.s32.totalorder %s16, 1
    %p69 = por %p67, %p68
    %p70 = scmp.ne.s32.totalorder %s61, %s62
    %p71 = scmp.eq.s32.totalorder %s16, 0
    %p72 = por %p70, %p71
    %p73 = scmp.ne.s32.totalorder %s61, %s62
    %p74 = scmp.eq.s32.totalorder %s17, 1
    %p75 = por %p73, %p74
    %p77 = scmp.ne.s32.totalorder %s62, %s76
    %p78 = scmp.eq.s32.totalorder %s17, 0
    %p79 = por %p77, %p78
    %s81 = sadd.s32 %s80, 1
    %p84 = scmp.eq.s32.totalorder %s11, 1
    %p85 = scmp.ne.s32.totalorder %s80, %s82
    %p86 = scmp.eq.s32.totalorder %s11, 0
    %p87 = por %p85, %p86
    %p88 = scmp.ne.s32.totalorder %s80, %s82
    %p89 = scmp.eq.s32.totalorder %s16, 1
    %p90 = por %p88, %p89
    %p91 = scmp.ne.s32.totalorder %s82, %s83
    %p92 = scmp.eq.s32.totalorder %s16, 0
    %p93 = por %p91, %p92
    %p94 = scmp.ne.s32.totalorder %s82, %s83
    %p95 = scmp.eq.s32.totalorder %s17, 1
    %p96 = por %p94, %p95
    %p98 = scmp.ne.s32.totalorder %s83, %s97
    %p99 = scmp.eq.s32.totalorder %s17, 0
    %p100 = por %p98, %p99
    %s102 = sadd.s32 %s101, 1
    %p105 = scmp.eq.s32.totalorder %s11, 1
    %p106 = scmp.ne.s32.totalorder %s101, %s103
    %p107 = scmp.eq.s32.totalorder %s11, 0
    %p108 = por %p106, %p107
    %p109 = scmp.ne.s32.totalorder %s101, %s103
    %p110 = scmp.eq.s32.totalorder %s16, 1
    %p111 = por %p109, %p110
    %p112 = scmp.ne.s32.totalorder %s103, %s104
    %p113 = scmp.eq.s32.totalorder %s16, 0
    %p114 = por %p112, %p113
    %p115 = scmp.ne.s32.totalorder %s103, %s104
    %p116 = scmp.eq.s32.totalorder %s17, 1
    %p117 = por %p115, %p116
    %p119 = scmp.ne.s32.totalorder %s104, %s118
    %p120 = scmp.eq.s32.totalorder %s17, 0
    %p121 = por %p119, %p120
    %s123 = sadd.s32 %s122, 1
    %p126 = scmp.eq.s32.totalorder %s11, 1
    %p127 = scmp.ne.s32.totalorder %s122, %s124
    %p128 = scmp.eq.s32.totalorder %s11, 0
    %p129 = por %p127, %p128
    %p130 = scmp.ne.s32.totalorder %s122, %s124
    %p131 = scmp.eq.s32.totalorder %s16, 1
    %p132 = por %p130, %p131
    %p133 = scmp.ne.s32.totalorder %s124, %s125
    %p134 = scmp.eq.s32.totalorder %s16, 0
    %p135 = por %p133, %p134
    %p136 = scmp.ne.s32.totalorder %s124, %s125
    %p137 = scmp.eq.s32.totalorder %s17, 1
    %p138 = por %p136, %p137
    %p140 = scmp.ne.s32.totalorder %s125, %s139
    %p141 = scmp.eq.s32.totalorder %s17, 0
    %p142 = por %p140, %p141
    %s143 = ssub.s32 %s18, %s30
    %s144 = ssub.s32 %s19, %s26
    %s145 = sor.u32 %s143, %s144
    %p146 = scmp.eq.s32.totalorder %s145, 0
    %s148 = sadd.s32 %s147, 1
    %s149 = scalar_select %p146, %s147, %s148
    %p152 = pneg %p146
    %p153 = scmp.eq.s32.totalorder %s11, 1
    %p154 = por %p152, %p153
    %p155 = scmp.ne.s32.totalorder %s147, %s150
    %p156 = scmp.eq.s32.totalorder %s11, 0
    %p157 = por %p155, %p156
    %p158 = scmp.ne.s32.totalorder %s147, %s150
    %p159 = scmp.eq.s32.totalorder %s16, 1
    %p160 = por %p158, %p159
    %p161 = scmp.ne.s32.totalorder %s150, %s151
    %p162 = scmp.eq.s32.totalorder %s16, 0
    %p163 = por %p161, %p162
    %p164 = scmp.ne.s32.totalorder %s150, %s151
    %p165 = scmp.eq.s32.totalorder %s17, 1
    %p166 = por %p164, %p165
    %p168 = scmp.ne.s32.totalorder %s151, %s167
    %p169 = scmp.eq.s32.totalorder %s17, 0
    %p170 = por %p168, %p169
    %p171 = scmp.le.s32.totalorder 1, %s11
    %p172 = scmp.lt.s32.totalorder %s11, 3
    %p173 = pnand %p171, %p172
    %p174 = pneg %p173
    // Predicated region
    $region9: #{tpu_custom_call.1} parent=5 // pred_check
      _
    $region10: #{tpu_custom_call.1} parent=5 // pred_check_branch
      %176 = sbr.rel (%p173) target = $region12
    $region11: #{tpu_custom_call.1} parent=5 // pred_region
      %s177 = ssub.s32 %s11, 1
      // Predicated region
      $region13: #{tpu_custom_call.1} parent=11 // pred_check
        %p178 = pneg %p72
      $region14: #{tpu_custom_call.1} parent=11 // pred_check_branch
        %180 = sbr.rel (%p178) target = $region16
      $region15: #{tpu_custom_call.1} parent=11 // pred_region
        _
      $region16: #{tpu_custom_call.1} parent=11 // pred_fallthru
        _
      // Predicated region
      $region17: #{tpu_custom_call.1} parent=11 // pred_check
        %p181 = pneg %p93
      $region18: #{tpu_custom_call.1} parent=11 // pred_check_branch
        %183 = sbr.rel (%p181) target = $region20
      $region19: #{tpu_custom_call.1} parent=11 // pred_region
        _
      $region20: #{tpu_custom_call.1} parent=11 // pred_fallthru
        _
      // Predicated region
      $region21: #{tpu_custom_call.1} parent=11 // pred_check
        %p184 = pneg %p114
      $region22: #{tpu_custom_call.1} parent=11 // pred_check_branch
        %186 = sbr.rel (%p184) target = $region24
      $region23: #{tpu_custom_call.1} parent=11 // pred_region
        _
      $region24: #{tpu_custom_call.1} parent=11 // pred_fallthru
        _
      // Predicated region
      $region25: #{tpu_custom_call.1} parent=11 // pred_check
        %p187 = pneg %p135
      $region26: #{tpu_custom_call.1} parent=11 // pred_check_branch
        %189 = sbr.rel (%p187) target = $region28
      $region27: #{tpu_custom_call.1} parent=11 // pred_region
        _
      $region28: #{tpu_custom_call.1} parent=11 // pred_fallthru
        _
    $region12: #{tpu_custom_call.1} parent=5 // pred_fallthru
      _
    %p190 = scmp.lt.s32.totalorder %s11, 2
    // Predicated region
    $region29: #{tpu_custom_call.1} parent=5 // pred_check
      %p191 = pneg %p190
    $region30: #{tpu_custom_call.1} parent=5 // pred_check_branch
      %193 = sbr.rel (%p191) target = $region32
    $region31: #{tpu_custom_call.1} parent=5 // pred_region
      // Predicated region
      $region33: #{tpu_custom_call.1} parent=31 // pred_check
        %p194 = pneg %p45
      $region34: #{tpu_custom_call.1} parent=31 // pred_check_branch
        %196 = sbr.rel (%p194) target = $region36
      $region35: #{tpu_custom_call.1} parent=31 // pred_region
        %s197 = smul.u32 2, %s19
        %p198 = scmp.lt.s32.totalorder %s18, 1
        %s199 = scalar_select %p198, %s18, 1
        %p200 = scmp.lt.s32.totalorder %s197, 1
        %s201 = scalar_select %p200, %s197, 1
        %s202 = smul.addr %s199, 2
        %s203 = sadd.s32 %s201, %s202
        %s204 = smul.addr %s203, 8
        %s205 = scalar_lea.vmem %s0, %s204
        %s206 = smul.u32 2, %s19
      $region36: #{tpu_custom_call.1} parent=31 // pred_fallthru
        _
    $region32: #{tpu_custom_call.1} parent=5 // pred_fallthru
      _
    %p207 = scmp.le.s32.totalorder 1, %s11
    %p208 = scmp.lt.s32.totalorder %s11, 3
    %p209 = pnand %p207, %p208
    %p210 = pneg %p209
    // Predicated region
    $region37: #{tpu_custom_call.1} parent=5 // pred_check
      _
    $region38: #{tpu_custom_call.1} parent=5 // pred_check_branch
      %212 = sbr.rel (%p209) target = $region40
    $region39: #{tpu_custom_call.1} parent=5 // pred_region
      %s213 = ssub.s32 %s11, 1
      %s214 = smul.u32 2, %s21
      %p215 = scmp.lt.s32.totalorder %s20, 1
      %s216 = scalar_select %p215, %s20, 1
      %p217 = scmp.lt.s32.totalorder %s214, 1
      %s218 = scalar_select %p217, %s214, 1
      %s219 = smul.addr %s216, 2
      %s220 = sadd.s32 %s218, %s219
      %s221 = smul.addr %s220, 8
      %s222 = scalar_lea.vmem %s0, %s221
      %p223 = pneg %p51
      %p224 = pneg %p48
      %p225 = pneg %p72
      %p226 = pneg %p69
      %p227 = pneg %p93
      %p228 = pneg %p90
      %p229 = pneg %p114
      %p230 = pneg %p111
      %p231 = pneg %p135
      %p232 = pneg %p132
      %p233 = pneg %p163
      %p234 = pneg %p160
      %s235 = smul.u32 2, %s21
      %p236 = scmp.lt.s32.totalorder %s20, 1
      %s237 = scalar_select %p236, %s20, 1
      %p238 = scmp.lt.s32.totalorder %s235, 1
      %s239 = scalar_select %p238, %s235, 1
      %s240 = smul.addr %s237, 2
      %s241 = sadd.s32 %s239, %s240
      %s242 = smul.addr %s241, 8
      %s243 = scalar_lea.vmem %s5, %s242
      %s244 = smul.u32 2, %s21
      %p245 = scmp.lt.s32.totalorder %s20, 1
      %s246 = scalar_select %p245, %s20, 1
      %p247 = scmp.lt.s32.totalorder %s244, 1
      %s248 = scalar_select %p247, %s244, 1
      %s249 = smul.addr %s246, 2
      %s250 = sadd.s32 %s248, %s249
      %s251 = smul.addr %s250, 8
      %s252 = scalar_lea.vmem %s0, %s251
      %s253 = smul.u32 2, %s21
      %s254 = smul.u32 2, %s21
      %p255 = scmp.lt.s32.totalorder %s20, 1
      %s256 = scalar_select %p255, %s20, 1
      %p257 = scmp.lt.s32.totalorder %s254, 1
      %s258 = scalar_select %p257, %s254, 1
      %s259 = smul.addr %s256, 2
      %s260 = sadd.s32 %s258, %s259
      %s261 = smul.addr %s260, 8
      %s262 = scalar_lea.vmem %s5, %s261
      %s263 = smul.u32 2, %s21
      %v264 = vld [vmem:[%s1] sm:$0xff]
      %v265 = vld [vmem:[%s1 + $0x8] sm:$0xff]
      %v266 = vld [vmem:[%s1 + $0x10] sm:$0xff]
      %v267 = vld [vmem:[%s1 + $0x18] sm:$0xff]
      %v268 = vld [vmem:[%s1 + $0x20] sm:$0xff]
      %v269 = vld [vmem:[%s1 + $0x28] sm:$0xff]
      %v270 = vld [vmem:[%s1 + $0x30] sm:$0xff]
      %v271 = vld [vmem:[%s1 + $0x38] sm:$0xff]
      %v272 = vld [vmem:[%s1 + $0x40] sm:$0xff]
      %v273 = vld [vmem:[%s1 + $0x48] sm:$0xff]
      %v274 = vld [vmem:[%s1 + $0x50] sm:$0xff]
      %v275 = vld [vmem:[%s1 + $0x58] sm:$0xff]
      %v276 = vld [vmem:[%s3] sm:$0x1f]
      %v277 = vld [vmem:[%s2] sm:$0xff]
      %v278 = vld [vmem:[%s2 + $0x8] sm:$0xff]
      %v279 = vld [vmem:[%s2 + $0x10] sm:$0xff]
      %v280 = vld [vmem:[%s2 + $0x18] sm:$0xff]
      %v281 = vld [vmem:[%s2 + $0x20] sm:$0xff]
      %v282 = vld [vmem:[%s2 + $0x28] sm:$0xff]
      %v283 = vld [vmem:[%s2 + $0x30] sm:$0xff]
      %v284 = vld [vmem:[%s2 + $0x38] sm:$0xff]
      %v285 = vld [vmem:[%s2 + $0x40] sm:$0xff]
      %v286 = vld [vmem:[%s2 + $0x48] sm:$0xff]
      %v287 = vld [vmem:[%s2 + $0x50] sm:$0xff]
      %v288 = vld [vmem:[%s2 + $0x58] sm:$0xff]
      %290 = vset.pattern.permute.xlu0 0
      %291 = vperm.xlu0 %290, %v277
      %v292 = vpop.permute.xlu0 %291
      %295 = vset.pattern.permute.xlu0 0
      %296 = vperm.xlu0 %295, %v278
      %v297 = vpop.permute.xlu0 %296
      %300 = vset.pattern.permute.xlu0 0
      %301 = vperm.xlu0 %300, %v279
      %v302 = vpop.permute.xlu0 %301
      %305 = vset.pattern.permute.xlu0 0
      %306 = vperm.xlu0 %305, %v280
      %v307 = vpop.permute.xlu0 %306
      %310 = vset.pattern.permute.xlu0 0
      %311 = vperm.xlu0 %310, %v281
      %v312 = vpop.permute.xlu0 %311
      %315 = vset.pattern.permute.xlu0 0
      %316 = vperm.xlu0 %315, %v282
      %v317 = vpop.permute.xlu0 %316
      %320 = vset.pattern.permute.xlu0 0
      %321 = vperm.xlu0 %320, %v283
      %v322 = vpop.permute.xlu0 %321
      %325 = vset.pattern.permute.xlu0 0
      %326 = vperm.xlu0 %325, %v284
      %v327 = vpop.permute.xlu0 %326
      %330 = vset.pattern.permute.xlu0 0
      %331 = vperm.xlu0 %330, %v285
      %v332 = vpop.permute.xlu0 %331
      %335 = vset.pattern.permute.xlu0 0
      %336 = vperm.xlu0 %335, %v286
      %v337 = vpop.permute.xlu0 %336
      %340 = vset.pattern.permute.xlu0 0
      %341 = vperm.xlu0 %340, %v287
      %v342 = vpop.permute.xlu0 %341
      %345 = vset.pattern.permute.xlu0 0
      %346 = vperm.xlu0 %345, %v288
      %v347 = vpop.permute.xlu0 %346
      %v349 = vld [vmem:[%s4] sm:$0x1f]
      %351 = vset.pattern.permute.xlu0 0
      %352 = vperm.xlu0 %351, %v349
      %v353 = vpop.permute.xlu0 %352
      %v355 = vld [vmem:[%s252] sm:$0x3f]
      %v356 = vld [vmem:[%s252 + $0x8] sm:$0x3f]
      %vm357 = vcmask 48128
      %v359 = vsel %vm357, %v264, 0
      %v362 = vsel %vm357, %v265, 0
      %v365 = vsel %vm357, %v266, 0
      %v368 = vsel %vm357, %v267, 0
      %v371 = vsel %vm357, %v268, 0
      %v374 = vsel %vm357, %v269, 0
      %v377 = vsel %vm357, %v270, 0
      %v380 = vsel %vm357, %v271, 0
      %v383 = vsel %vm357, %v272, 0
      %v386 = vsel %vm357, %v273, 0
      %v389 = vsel %vm357, %v274, 0
      %v392 = vsel %vm357, %v275, 0
      %vm394 = vcmask 1045504
      %v396 = vsel %vm394, %v355, 0
      %v399 = vsel %vm394, %v356, 0
      %401 = vmatprep.subr.mxu0 %v399
      %402 = vmatpush1.msra.mxu0 %v396
      %403 = vmatprep.subr.mxu0 0.0
      %404 = vmatpush1.msra.mxu0 0.0
      %405 = vmatprep.subr.mxu0 0.0
      %406 = vmatpush1.msra.mxu0 0.0
      %407 = vmatprep.subr.mxu0 0.0
      %408 = vmatpush1.msra.mxu0 0.0
      %409 = vmatprep.subr.mxu0 0.0
      %410 = vmatpush1.msra.mxu0 0.0
      %411 = vmatprep.subr.mxu0 0.0
      %412 = vmatpush1.msra.mxu0 0.0
      %413 = vmatprep.subr.mxu0 0.0
      %414 = vmatpush1.msra.mxu0 0.0
      %415 = vmatprep.subr.mxu0 0.0
      %416 = vmatpush1.msra.mxu0 0.0
      %417 = vmatprep.subr.mxu0 0.0
      %418 = vmatpush1.msra.mxu0 0.0
      %419 = vmatprep.subr.mxu0 0.0
      %420 = vmatpush1.msra.mxu0 0.0
      %421 = vmatprep.subr.mxu0 0.0
      %422 = vmatpush1.msra.mxu0 0.0
      %423 = vmatprep.subr.mxu0 0.0
      %424 = vmatpush1.msra.mxu0 0.0
      %425 = vmatprep.subr.mxu0 0.0
      %426 = vmatpush1.msra.mxu0 0.0
      %427 = vmatprep.subr.mxu0 0.0
      %428 = vmatpush1.msra.mxu0 0.0
      %429 = vmatprep.subr.mxu0 0.0
      %430 = vmatpush1.msra.mxu0 0.0
      %431 = vmatprep.subr.mxu0 0.0
      %432 = vmatpush1.msra.mxu0 0.0
      %433 = vmatprep.subr.mxu0 0.0
      %434 = vmatpush1.msra.mxu0 0.0
      %435 = vmatprep.subr.mxu0 0.0
      %436 = vmatpush1.msra.mxu0 0.0
      %437 = vmatprep.subr.mxu0 0.0
      %438 = vmatpush1.msra.mxu0 0.0
      %439 = vmatprep.subr.mxu0 0.0
      %440 = vmatpush1.msra.mxu0 0.0
      %441 = vmatprep.subr.mxu0 0.0
      %442 = vmatpush1.msra.mxu0 0.0
      %443 = vmatprep.subr.mxu0 0.0
      %444 = vmatpush1.msra.mxu0 0.0
      %445 = vmatprep.subr.mxu0 0.0
      %446 = vmatpush1.msra.mxu0 0.0
      %447 = vmatprep.subr.mxu0 0.0
      %448 = vmatpush1.msra.mxu0 0.0
      %449 = vmatprep.subr.mxu0 0.0
      %450 = vmatpush1.msra.mxu0 0.0
      %451 = vmatprep.subr.mxu0 0.0
      %452 = vmatpush1.msra.mxu0 0.0
      %453 = vmatprep.subr.mxu0 0.0
      %454 = vmatpush1.msra.mxu0 0.0
      %455 = vmatprep.subr.mxu0 0.0
      %456 = vmatpush1.msra.mxu0 0.0
      %457 = vmatprep.subr.mxu0 0.0
      %458 = vmatpush1.msra.mxu0 0.0
      %459 = vmatprep.subr.mxu0 0.0
      %460 = vmatpush1.msra.mxu0 0.0
      %461 = vmatprep.subr.mxu0 0.0
      %462 = vmatpush1.msra.mxu0 0.0
      %463 = vmatprep.subr.mxu0 0.0
      %464 = vmatpush1.msra.mxu0 0.0
      %465 = vmatprep.mubr.f32.mxu0 0.0
      %466 = vmatmul.mubr.f32.gmra.mrb[0].mxu0 %v359
      %v467 = vpop.f32.mrb[0].mxu0
      %v468 = vadd.f32 %v292, %v467
      %v469 = vpop.f32.mrb[0].mxu0
      %v470 = vadd.f32 %v292, %v469
      %471 = vmatprep.mubr.f32.mxu0 0.0
      %472 = vmatmul.mubr.f32.gmra.mrb[0].mxu0 %v362
      %v473 = vpop.f32.mrb[0].mxu0
      %v474 = vadd.f32 %v297, %v473
      %v475 = vpop.f32.mrb[0].mxu0
      %v476 = vadd.f32 %v297, %v475
      %477 = vmatprep.mubr.f32.mxu0 0.0
      %478 = vmatmul.mubr.f32.gmra.mrb[0].mxu0 %v365
      %v479 = vpop.f32.mrb[0].mxu0
      %v480 = vadd.f32 %v302, %v479
      %v481 = vpop.f32.mrb[0].mxu0
      %v482 = vadd.f32 %v302, %v481
      %483 = vmatprep.mubr.f32.mxu0 0.0
      %484 = vmatmul.mubr.f32.gmra.mrb[0].mxu0 %v368
      %v485 = vpop.f32.mrb[0].mxu0
      %v486 = vadd.f32 %v307, %v485
      %v487 = vpop.f32.mrb[0].mxu0
      %v488 = vadd.f32 %v307, %v487
      %489 = vmatprep.mubr.f32.mxu0 0.0
      %490 = vmatmul.mubr.f32.gmra.mrb[0].mxu0 %v371
      %v491 = vpop.f32.mrb[0].mxu0
      %v492 = vadd.f32 %v312, %v491
      %v493 = vpop.f32.mrb[0].mxu0
      %v494 = vadd.f32 %v312, %v493
      %495 = vmatprep.mubr.f32.mxu0 0.0
      %496 = vmatmul.mubr.f32.gmra.mrb[0].mxu0 %v374
      %v497 = vpop.f32.mrb[0].mxu0
      %v498 = vadd.f32 %v317, %v497
      %v499 = vpop.f32.mrb[0].mxu0
      %v500 = vadd.f32 %v317, %v499
      %501 = vmatprep.mubr.f32.mxu0 0.0
      %502 = vmatmul.mubr.f32.gmra.mrb[0].mxu0 %v377
      %v503 = vpop.f32.mrb[0].mxu0
      %v504 = vadd.f32 %v322, %v503
      %v505 = vpop.f32.mrb[0].mxu0
      %v506 = vadd.f32 %v322, %v505
      %507 = vmatprep.mubr.f32.mxu0 0.0
      %508 = vmatmul.mubr.f32.gmra.mrb[0].mxu0 %v380
      %v509 = vpop.f32.mrb[0].mxu0
      %v510 = vadd.f32 %v327, %v509
      %v511 = vpop.f32.mrb[0].mxu0
      %v512 = vadd.f32 %v327, %v511
      %513 = vmatprep.mubr.f32.mxu0 0.0
      %514 = vmatmul.mubr.f32.gmra.mrb[0].mxu0 %v383
      %v515 = vpop.f32.mrb[0].mxu0
      %v516 = vadd.f32 %v332, %v515
      %v517 = vpop.f32.mrb[0].mxu0
      %v518 = vadd.f32 %v332, %v517
      %519 = vmatprep.mubr.f32.mxu0 0.0
      %520 = vmatmul.mubr.f32.gmra.mrb[0].mxu0 %v386
      %v521 = vpop.f32.mrb[0].mxu0
      %v522 = vadd.f32 %v337, %v521
      %v523 = vpop.f32.mrb[0].mxu0
      %v524 = vadd.f32 %v337, %v523
      %525 = vmatprep.mubr.f32.mxu0 0.0
      %526 = vmatmul.mubr.f32.gmra.mrb[0].mxu0 %v389
      %v527 = vpop.f32.mrb[0].mxu0
      %v528 = vadd.f32 %v342, %v527
      %v529 = vpop.f32.mrb[0].mxu0
      %v530 = vadd.f32 %v342, %v529
      %531 = vmatprep.mubr.f32.mxu0 0.0
      %532 = vmatmul.mubr.f32.gmra.mrb[0].mxu0 %v392
      %v533 = vpop.f32.mrb[0].mxu0
      %v534 = vadd.f32 %v347, %v533
      %v535 = vpop.f32.mrb[0].mxu0
      %v536 = vadd.f32 %v347, %v535
      %537 = vdwg.mxu0
      %v538 = vmax.f32 %v468, 0.0
      %v539 = vmax.f32 %v470, 0.0
      %v540 = vmax.f32 %v474, 0.0
      %v541 = vmax.f32 %v476, 0.0
      %v542 = vmax.f32 %v480, 0.0
      %v543 = vmax.f32 %v482, 0.0
      %v544 = vmax.f32 %v486, 0.0
      %v545 = vmax.f32 %v488, 0.0
      %v546 = vmax.f32 %v492, 0.0
      %v547 = vmax.f32 %v494, 0.0
      %v548 = vmax.f32 %v498, 0.0
      %v549 = vmax.f32 %v500, 0.0
      %v550 = vmax.f32 %v504, 0.0
      %v551 = vmax.f32 %v506, 0.0
      %v552 = vmax.f32 %v510, 0.0
      %v553 = vmax.f32 %v512, 0.0
      %v554 = vmax.f32 %v516, 0.0
      %v555 = vmax.f32 %v518, 0.0
      %v556 = vmax.f32 %v522, 0.0
      %v557 = vmax.f32 %v524, 0.0
      %v558 = vmax.f32 %v528, 0.0
      %v559 = vmax.f32 %v530, 0.0
      %v560 = vmax.f32 %v534, 0.0
      %v561 = vmax.f32 %v536, 0.0
      %vm562 = vcmask 785408
      %v564 = vsel %vm562, %v276, 0
      %566 = vmatprep.subr.mxu0 %v539
      %567 = vmatpush1.msra.mxu0 %v538
      %568 = vmatprep.subr.mxu0 %v541
      %569 = vmatpush1.msra.mxu0 %v540
      %570 = vmatprep.subr.mxu0 %v543
      %571 = vmatpush1.msra.mxu0 %v542
      %572 = vmatprep.subr.mxu0 %v545
      %573 = vmatpush1.msra.mxu0 %v544
      %574 = vmatprep.subr.mxu0 %v547
      %575 = vmatpush1.msra.mxu0 %v546
      %576 = vmatprep.subr.mxu0 %v549
      %577 = vmatpush1.msra.mxu0 %v548
      %578 = vmatprep.subr.mxu0 %v551
      %579 = vmatpush1.msra.mxu0 %v550
      %580 = vmatprep.subr.mxu0 %v553
      %581 = vmatpush1.msra.mxu0 %v552
      %582 = vmatprep.subr.mxu0 %v555
      %583 = vmatpush1.msra.mxu0 %v554
      %584 = vmatprep.subr.mxu0 %v557
      %585 = vmatpush1.msra.mxu0 %v556
      %586 = vmatprep.subr.mxu0 %v559
      %587 = vmatpush1.msra.mxu0 %v558
      %588 = vmatprep.subr.mxu0 %v561
      %589 = vmatpush1.msra.mxu0 %v560
      %590 = vmatprep.subr.mxu0 0.0
      %591 = vmatpush1.msra.mxu0 0.0
      %592 = vmatprep.subr.mxu0 0.0
      %593 = vmatpush1.msra.mxu0 0.0
      %594 = vmatprep.subr.mxu0 0.0
      %595 = vmatpush1.msra.mxu0 0.0
      %596 = vmatprep.subr.mxu0 0.0
      %597 = vmatpush1.msra.mxu0 0.0
      %598 = vmatprep.subr.mxu0 0.0
      %599 = vmatpush1.msra.mxu0 0.0
      %600 = vmatprep.subr.mxu0 0.0
      %601 = vmatpush1.msra.mxu0 0.0
      %602 = vmatprep.subr.mxu0 0.0
      %603 = vmatpush1.msra.mxu0 0.0
      %604 = vmatprep.subr.mxu0 0.0
      %605 = vmatpush1.msra.mxu0 0.0
      %606 = vmatprep.subr.mxu0 0.0
      %607 = vmatpush1.msra.mxu0 0.0
      %608 = vmatprep.subr.mxu0 0.0
      %609 = vmatpush1.msra.mxu0 0.0
      %610 = vmatprep.subr.mxu0 0.0
      %611 = vmatpush1.msra.mxu0 0.0
      %612 = vmatprep.subr.mxu0 0.0
      %613 = vmatpush1.msra.mxu0 0.0
      %614 = vmatprep.subr.mxu0 0.0
      %615 = vmatpush1.msra.mxu0 0.0
      %616 = vmatprep.subr.mxu0 0.0
      %617 = vmatpush1.msra.mxu0 0.0
      %618 = vmatprep.subr.mxu0 0.0
      %619 = vmatpush1.msra.mxu0 0.0
      %620 = vmatprep.subr.mxu0 0.0
      %621 = vmatpush1.msra.mxu0 0.0
      %622 = vmatprep.subr.mxu0 0.0
      %623 = vmatpush1.msra.mxu0 0.0
      %624 = vmatprep.subr.mxu0 0.0
      %625 = vmatpush1.msra.mxu0 0.0
      %626 = vmatprep.subr.mxu0 0.0
      %627 = vmatpush1.msra.mxu0 0.0
      %628 = vmatprep.subr.mxu0 0.0
      %629 = vmatpush1.msra.mxu0 0.0
      %630 = vmatprep.mubr.f32.mxu0 0.0
      %631 = vmatmul.mubr.f32.gmra.mrb[0].mxu0 %v564
      %v632 = vpop.f32.mrb[0].mxu0
      %v633 = vadd.f32 %v353, %v632
      %v634 = vpop.f32.mrb[0].mxu0
      %v635 = vadd.f32 %v353, %v634
      %636 = vdwg.mxu0
      %637 = vst [vmem:[%s262] sm:$0x1f] %v633
      %638 = vst [vmem:[%s262 + $0x8] sm:$0x1f] %v635
      %s639 = smul.u32 2, %s21
      %p640 = scmp.lt.s32.totalorder %s20, 1
      %s641 = scalar_select %p640, %s20, 1
      %p642 = scmp.lt.s32.totalorder %s639, 1
      %s643 = scalar_select %p642, %s639, 1
      %s644 = smul.addr %s641, 2
      %s645 = sadd.s32 %s643, %s644
      %s646 = smul.addr %s645, 8
      %s647 = scalar_lea.vmem %s5, %s646
      // Predicated region
      $region41: #{tpu_custom_call.1} parent=39 // pred_check
        %p648 = pneg %p160
      $region42: #{tpu_custom_call.1} parent=39 // pred_check_branch
        %650 = sbr.rel (%p648) target = $region44
      $region43: #{tpu_custom_call.1} parent=39 // pred_region
        %s651 = smul.u32 2, %s21
      $region44: #{tpu_custom_call.1} parent=39 // pred_fallthru
        _
    $region40: #{tpu_custom_call.1} parent=5 // pred_fallthru
      _
    %p652 = scmp.le.s32.totalorder 2, %s11
    // Predicated region
    $region45: #{tpu_custom_call.1} parent=5 // pred_check
      %p653 = pneg %p652
    $region46: #{tpu_custom_call.1} parent=5 // pred_check_branch
      %655 = sbr.rel (%p653) target = $region48
    $region47: #{tpu_custom_call.1} parent=5 // pred_region
      %s656 = ssub.s32 %s11, 2
      // Predicated region
      $region49: #{tpu_custom_call.1} parent=47 // pred_check
        %p657 = pneg %p166
      $region50: #{tpu_custom_call.1} parent=47 // pred_check_branch
        %659 = sbr.rel (%p657) target = $region52
      $region51: #{tpu_custom_call.1} parent=47 // pred_region
        %s660 = smul.u32 2, %s23
        %p661 = scmp.lt.s32.totalorder %s22, 1
        %s662 = scalar_select %p661, %s22, 1
        %p663 = scmp.lt.s32.totalorder %s660, 1
        %s664 = scalar_select %p663, %s660, 1
        %s665 = smul.addr %s662, 2
        %s666 = sadd.s32 %s664, %s665
        %s667 = smul.addr %s666, 8
        %s668 = scalar_lea.vmem %s5, %s667
      $region52: #{tpu_custom_call.1} parent=47 // pred_fallthru
        _
    $region48: #{tpu_custom_call.1} parent=5 // pred_fallthru
      _
  $region6: #{tpu_custom_call.1} parent=0 // loop_footer
    %s15 = sadd.s32 1, %s11
  $region7: #{tpu_custom_call.1} parent=0 // loop_footer_branch
    %10 = sbr.rel target = $region3
  $region8: #{tpu_custom_call.1} parent=0 // loop_exit
    _

</llo_original>
